<compile_context>
chip_gen: v6e
topology: v6e:2x2x1
jax: 0.10.0
libtpu: 0.0.40
codegen_flags: <defaults>
</compile_context>

<pallas_src>
import functools

import jax
import jax.numpy as jnp
from jax import lax
from jax.experimental import pallas as pl
from jax.experimental.pallas import tpu as pltpu


def _style_block_kernel(x_ref, w_ref, bc_ref, g_ref, b_ref, o_ref, xs_ref,
                        *, K, dil, L, Bt):
    """Fused Conv1d + bias + ReLU + AdaIN for Bt batch elements per grid step.

    x_ref  : (Bt, C, Lp)   padded input, compute dtype (bf16 by default)
    w_ref  : (C, K*C)      conv weight, taps flattened into the contraction dim
    bc_ref : (C, 1)        conv bias (f32)
    g_ref  : (Bt, C, 1)    AdaIN gains  (style FC hoisted to the wrapper, f32)
    b_ref  : (Bt, C, 1)    AdaIN biases (style FC hoisted to the wrapper, f32)
    o_ref  : (Bt, C, L)    output (f32)
    xs_ref : (K*C, Bt*L)   VMEM scratch: im2col staging slab, compute dtype
    """
    C = o_ref.shape[1]
    inv_l = 1.0 / L
    # TODO(synk): torch.var(unbiased=True) is NaN for L == 1; this guard
    # silently yields a finite value instead (behavioral divergence for L==1).
    inv_dof = 1.0 / max(L - 1, 1)

    # --- Stage all Bt elements x K taps into ONE slab. x and the slab share
    #     compute_dtype, so these are pure copies (no per-tap cast pass).
    # TODO(synk): for production Bt/C/L use lax.fori_loop(..., unroll=True) to
    # bound live ranges, and on v6e/v7x benchmark K accumulating matmuls on
    # shifted views instead of staging (vst-slot vs MXU tradeoff).
    for b in range(Bt):
        xp = x_ref[b]                                          # (C, Lp)
        for t in range(K):
            xs_ref[pl.ds(t * C, C), pl.ds(b * L, L)] = xp[:, t * dil:t * dil + L]

    # --- ONE MXU matmul per grid step: (C, K*C) x (K*C, Bt*L) -> f32 acc ---
    a_all = jnp.dot(w_ref[...], xs_ref[...], preferred_element_type=jnp.float32)
    a_all = jnp.maximum(a_all + bc_ref[...], 0.0)              # bias + ReLU, f32

    # --- AdaIN per batch element (two-pass mean/var; unbiased as torch.var) ---
    for b in range(Bt):
        a = a_all[:, b * L:(b + 1) * L]                        # (C, L) f32
        mean = jnp.sum(a, axis=1, keepdims=True) * inv_l       # (C, 1)
        c = a - mean
        var = jnp.sum(c * c, axis=1, keepdims=True) * inv_dof  # unbiased
        scale = g_ref[b] * lax.rsqrt(var + 1e-8)               # (C, 1)
        o_ref[b] = (scale * c + b_ref[b]).astype(o_ref.dtype)


def style_block_forward(x, style, conv_w, conv_b, fc_w, fc_b, dilation=1,
                        *, batch_tile=None, compute_dtype=jnp.bfloat16):
    """x: (B, C, L) f32, style: (B, S) f32. Matches StyleBlock.forward(style, x)."""
    B, C, L = x.shape
    K = conv_w.shape[2]
    # TODO(synk): even kernel_size changes output length in the PyTorch module
    # (pad = dil*(K-1)//2); only the odd-K 'same' case is implemented.
    assert K % 2 == 1, "only odd kernel_size supported"
    pad = dilation * (K - 1) // 2
    Lp = L + 2 * pad

    # ---- glue (plain JAX): tiny style FC, single pad pass, weight re-layout ----
    gb = (style @ fc_w.T + fc_b).astype(jnp.float32)            # (B, 2C)
    gains = gb[:, :C, None]                                     # (B, C, 1)
    biases = gb[:, C:, None]                                    # (B, C, 1)

    # Batch blocking: default keeps at least 2 grid steps so v7x's two
    # TensorCores both get work; cap at 8 elements per step.
    Bt = batch_tile if batch_tile is not None else max(1, min(8, B // 2))
    nb = pl.cdiv(B, Bt)
    Bp = nb * Bt

    # Single fused pass over x: cast to compute dtype + halo pad + batch pad.
    x_pad = jnp.pad(x.astype(compute_dtype), ((0, Bp - B), (0, 0), (pad, pad)))
    if Bp != B:
        gains = jnp.pad(gains, ((0, Bp - B), (0, 0), (0, 0)))
        biases = jnp.pad(biases, ((0, Bp - B), (0, 0), (0, 0)))

    # (C_out, C_in, K) -> (C_out, K*C_in), matching the im2col row order.
    w_flat = jnp.transpose(conv_w, (0, 2, 1)).reshape(C, K * C).astype(compute_dtype)
    bc = conv_b.reshape(C, 1).astype(jnp.float32)

    kernel = functools.partial(_style_block_kernel, K=K, dil=dilation, L=L, Bt=Bt)

    # Explicit VMEM budget: double-buffered blocks + resident weights + slab,
    # with headroom; floored at 16 MiB, capped well below physical VMEM.
    cbytes = jnp.dtype(compute_dtype).itemsize
    x_blk = Bt * C * Lp * cbytes
    out_blk = Bt * C * L * 4
    gb_blk = 2 * Bt * C * 4
    fixed = C * K * C * cbytes + C * 4 + K * C * Bt * L * cbytes
    vmem_limit = int(min(max(2 * (2 * (x_blk + out_blk + gb_blk) + fixed),
                             16 << 20), 100 << 20))

    # TODO(synk): for production sizes pad C to a multiple of 16 (ideally 128),
    # tile L in >=128-lane chunks with halo handling so stores are lane-dense,
    # and consider pl.Buffered(3) on the x spec if the trace shows exposed DMA.
    out = pl.pallas_call(
        kernel,
        out_shape=jax.ShapeDtypeStruct((Bp, C, L), jnp.float32),
        grid=(nb,),
        in_specs=[
            pl.BlockSpec((Bt, C, Lp), lambda i: (i, 0, 0)),     # x (padded, bf16)
            pl.BlockSpec((C, K * C), lambda i: (0, 0)),         # conv weight
            pl.BlockSpec((C, 1), lambda i: (0, 0)),             # conv bias
            pl.BlockSpec((Bt, C, 1), lambda i: (i, 0, 0)),      # AdaIN gains
            pl.BlockSpec((Bt, C, 1), lambda i: (i, 0, 0)),      # AdaIN biases
        ],
        out_specs=pl.BlockSpec((Bt, C, L), lambda i: (i, 0, 0)),
        scratch_shapes=[pltpu.VMEM((K * C, Bt * L), compute_dtype)],  # im2col slab
        compiler_params=pltpu.CompilerParams(
            dimension_semantics=("parallel",),
            vmem_limit_bytes=vmem_limit),
    )(x_pad, w_flat, bc, gains, biases)
    return out[:B]


def _reference_forward(x, style, conv_w, conv_b, fc_w, fc_b, dilation=1,
                       compute_dtype=jnp.float32):
    """Pure-JAX replica of the PyTorch StyleBlock.forward."""
    B, C, L = x.shape
    K = conv_w.shape[2]
    pad = dilation * (K - 1) // 2
    a = lax.conv_general_dilated(
        x.astype(compute_dtype), conv_w.astype(compute_dtype),
        window_strides=(1,), padding=[(pad, pad)], rhs_dilation=(dilation,),
        dimension_numbers=("NCH", "OIH", "NCH"),
        preferred_element_type=jnp.float32)
    a = a + conv_b[None, :, None]
    a = jnp.maximum(a, 0.0)
    gb = style @ fc_w.T + fc_b
    gains = gb[:, :C][:, :, None]
    biases = gb[:, C:][:, :, None]
    mean = a.mean(axis=2, keepdims=True)
    var = jnp.var(a, axis=2, ddof=1, keepdims=True)          # torch.var: unbiased
    normed = (a - mean) * lax.rsqrt(var + 1e-8)
    return gains * normed + biases


if __name__ == "__main__":
    # Small shapes consistent with the module: B=2, C=4, L=16, style_dim=8,
    # kernel_size=3, dilation=1.
    B, C, L, S, K, DIL = 2, 4, 16, 8, 3, 1

    key = jax.random.PRNGKey(0)
    kx, ks, kw, kb, kfw, kfb = jax.random.split(key, 6)

    x = jax.random.normal(kx, (B, C, L), dtype=jnp.float32)
    style = jax.random.normal(ks, (B, S), dtype=jnp.float32)
    conv_w = 0.1 * jax.random.normal(kw, (C, C, K), dtype=jnp.float32)
    conv_b = 0.1 * jax.random.normal(kb, (C,), dtype=jnp.float32)
    fc_w = 0.1 * jax.random.normal(kfw, (2 * C, S), dtype=jnp.float32)
    fc_b = 0.1 * jax.random.normal(kfb, (2 * C,), dtype=jnp.float32)

    # f32 compute path: exact check against the plain f32 reference.
    out_f32 = style_block_forward(x, style, conv_w, conv_b, fc_w, fc_b,
                                  dilation=DIL, compute_dtype=jnp.float32)
    out_f32 = jax.block_until_ready(out_f32)
    ref_f32 = _reference_forward(x, style, conv_w, conv_b, fc_w, fc_b,
                                 dilation=DIL, compute_dtype=jnp.float32)
    assert out_f32.shape == (B, C, L)
    assert jnp.allclose(out_f32, ref_f32, atol=1e-4, rtol=1e-4), \
        "f32 path mismatch vs reference"

    # Default path (bf16 MXU inputs, f32 accumulation): check against a
    # reference that applies the same bf16-input quantization to the conv.
    out_bf16 = style_block_forward(x, style, conv_w, conv_b, fc_w, fc_b,
                                   dilation=DIL)
    out_bf16 = jax.block_until_ready(out_bf16)
    ref_bf16 = _reference_forward(x, style, conv_w, conv_b, fc_w, fc_b,
                                  dilation=DIL, compute_dtype=jnp.bfloat16)
    assert out_bf16.shape == (B, C, L)
    assert jnp.allclose(out_bf16, ref_bf16, atol=1e-2, rtol=1e-2), \
        "bf16 path mismatch vs bf16 reference"

    # TODO(synk): the `initial=True` branch (learned constant + init_fc) of the
    # module is not exercised here; only the x-provided forward is implemented.
    print("KERNEL_OK")
</pallas_src>

<mosaic_0001>
module attributes {stable_mosaic.version = 11 : i64} {
  func.func @_style_block_kernel(%arg0: i32, %arg1: memref<1x4x18xf32, #tpu.memory_space<vmem>>, %arg2: memref<4x12xf32, #tpu.memory_space<vmem>>, %arg3: memref<4x1xf32, #tpu.memory_space<vmem>>, %arg4: memref<1x4x1xf32, #tpu.memory_space<vmem>>, %arg5: memref<1x4x1xf32, #tpu.memory_space<vmem>>, %arg6: memref<1x4x16xf32, #tpu.memory_space<vmem>>, %arg7: memref<12x16xf32, #tpu.memory_space<vmem>>) attributes {dimension_semantics = [#tpu.dimension_semantics<parallel>], iteration_bounds = array<i64: 2>, scalar_prefetch = 0 : i64, scratch_operands = 1 : i64, tpu.core_type = #tpu.core_type<tc>, window_params = [{transform_indices = @transform_0, window_bounds = array<i64: 1, 4, 18>}, {pipeline_mode = #tpu.pipeline_mode<synchronous>, transform_indices = @transform_1, window_bounds = array<i64: 4, 12>}, {pipeline_mode = #tpu.pipeline_mode<synchronous>, transform_indices = @transform_2, window_bounds = array<i64: 4, 1>}, {transform_indices = @transform_3, window_bounds = array<i64: 1, 4, 1>}, {transform_indices = @transform_4, window_bounds = array<i64: 1, 4, 1>}, {transform_indices = @transform_5, window_bounds = array<i64: 1, 4, 16>}]} {
    %c0 = arith.constant 0 : index
    %c0_0 = arith.constant 0 : index
    %c0_1 = arith.constant 0 : index
    %0 = vector.load %arg1[%c0, %c0_0, %c0_1] : memref<1x4x18xf32, #tpu.memory_space<vmem>>, vector<1x4x18xf32>
    %1 = vector.shape_cast %0 : vector<1x4x18xf32> to vector<4x18xf32>
    %2 = vector.extract_strided_slice %1 {offsets = [0, 0], sizes = [4, 16], strides = [1, 1]} : vector<4x18xf32> to vector<4x16xf32>
    %c0_2 = arith.constant 0 : index
    %c0_3 = arith.constant 0 : index
    %3 = vector.load %arg7[%c0_2, %c0_3] : memref<12x16xf32, #tpu.memory_space<vmem>>, vector<4x16xf32>
    tpu.vector_store %arg7[%c0_2, %c0_3], %2 {strides = array<i32>} : memref<12x16xf32, #tpu.memory_space<vmem>>, vector<4x16xf32>,
    %4 = vector.extract_strided_slice %1 {offsets = [0, 1], sizes = [4, 16], strides = [1, 1]} : vector<4x18xf32> to vector<4x16xf32>
    %c4 = arith.constant 4 : index
    %c0_4 = arith.constant 0 : index
    %5 = vector.load %arg7[%c4, %c0_4] : memref<12x16xf32, #tpu.memory_space<vmem>>, vector<4x16xf32>
    tpu.vector_store %arg7[%c4, %c0_4], %4 {strides = array<i32>} : memref<12x16xf32, #tpu.memory_space<vmem>>, vector<4x16xf32>,
    %6 = vector.extract_strided_slice %1 {offsets = [0, 2], sizes = [4, 16], strides = [1, 1]} : vector<4x18xf32> to vector<4x16xf32>
    %c8 = arith.constant 8 : index
    %c0_5 = arith.constant 0 : index
    %7 = vector.load %arg7[%c8, %c0_5] : memref<12x16xf32, #tpu.memory_space<vmem>>, vector<4x16xf32>
    tpu.vector_store %arg7[%c8, %c0_5], %6 {strides = array<i32>} : memref<12x16xf32, #tpu.memory_space<vmem>>, vector<4x16xf32>,
    %c0_6 = arith.constant 0 : index
    %c0_7 = arith.constant 0 : index
    %8 = vector.load %arg2[%c0_6, %c0_7] : memref<4x12xf32, #tpu.memory_space<vmem>>, vector<4x12xf32>
    %c0_8 = arith.constant 0 : index
    %c0_9 = arith.constant 0 : index
    %9 = vector.load %arg7[%c0_8, %c0_9] : memref<12x16xf32, #tpu.memory_space<vmem>>, vector<12x16xf32>
    %cst = arith.constant dense<0.000000e+00> : vector<4x16xf32>
    %10 = tpu.matmul %8, %9, %cst {dimension_numbers = #tpu.dot_dimension_numbers<[1], [0], [0], [1], [0, 0, 1, 1], [], []>} : vector<4x12xf32>, vector<12x16xf32>, vector<4x16xf32> -> vector<4x16xf32>
    %c0_10 = arith.constant 0 : index
    %c0_11 = arith.constant 0 : index
    %11 = vector.load %arg3[%c0_10, %c0_11] : memref<4x1xf32, #tpu.memory_space<vmem>>, vector<4x1xf32>
    %12 = vector.broadcast %11 : vector<4x1xf32> to vector<4x16xf32>
    %13 = arith.addf %10, %12 : vector<4x16xf32>
    %cst_12 = arith.constant 0.000000e+00 : f32
    %14 = vector.broadcast %cst_12 : f32 to vector<4x16xf32>
    %15 = arith.maximumf %13, %14 : vector<4x16xf32>
    %cst_13 = arith.constant dense<0.000000e+00> : vector<4xf32>
    %16 = vector.multi_reduction <add>, %15, %cst_13 [1] : vector<4x16xf32> to vector<4xf32>
    %17 = vector.shape_cast %16 : vector<4xf32> to vector<4x1xf32>
    %cst_14 = arith.constant 6.250000e-02 : f32
    %18 = vector.broadcast %cst_14 : f32 to vector<4x1xf32>
    %19 = arith.mulf %17, %18 : vector<4x1xf32>
    %20 = vector.broadcast %19 : vector<4x1xf32> to vector<4x16xf32>
    %21 = arith.subf %15, %20 : vector<4x16xf32>
    %22 = arith.mulf %21, %21 : vector<4x16xf32>
    %cst_15 = arith.constant dense<0.000000e+00> : vector<4xf32>
    %23 = vector.multi_reduction <add>, %22, %cst_15 [1] : vector<4x16xf32> to vector<4xf32>
    %24 = vector.shape_cast %23 : vector<4xf32> to vector<4x1xf32>
    %cst_16 = arith.constant 0.0666666701 : f32
    %25 = vector.broadcast %cst_16 : f32 to vector<4x1xf32>
    %26 = arith.mulf %24, %25 : vector<4x1xf32>
    %c0_17 = arith.constant 0 : index
    %c0_18 = arith.constant 0 : index
    %c0_19 = arith.constant 0 : index
    %27 = vector.load %arg4[%c0_17, %c0_18, %c0_19] : memref<1x4x1xf32, #tpu.memory_space<vmem>>, vector<1x4x1xf32>
    %28 = vector.shape_cast %27 : vector<1x4x1xf32> to vector<4x1xf32>
    %cst_20 = arith.constant 9.99999993E-9 : f32
    %29 = vector.broadcast %cst_20 : f32 to vector<4x1xf32>
    %30 = arith.addf %26, %29 : vector<4x1xf32>
    %31 = math.rsqrt %30 : vector<4x1xf32>
    %32 = arith.mulf %28, %31 : vector<4x1xf32>
    %33 = vector.broadcast %32 : vector<4x1xf32> to vector<4x16xf32>
    %34 = arith.mulf %33, %21 : vector<4x16xf32>
    %c0_21 = arith.constant 0 : index
    %c0_22 = arith.constant 0 : index
    %c0_23 = arith.constant 0 : index
    %35 = vector.load %arg5[%c0_21, %c0_22, %c0_23] : memref<1x4x1xf32, #tpu.memory_space<vmem>>, vector<1x4x1xf32>
    %36 = vector.shape_cast %35 : vector<1x4x1xf32> to vector<4x1xf32>
    %37 = vector.broadcast %36 : vector<4x1xf32> to vector<4x16xf32>
    %38 = arith.addf %34, %37 : vector<4x16xf32>
    %c0_24 = arith.constant 0 : index
    %c0_25 = arith.constant 0 : index
    %c0_26 = arith.constant 0 : index
    %39 = vector.load %arg6[%c0_24, %c0_25, %c0_26] : memref<1x4x16xf32, #tpu.memory_space<vmem>>, vector<1x4x16xf32>
    %40 = vector.shape_cast %39 : vector<1x4x16xf32> to vector<4x16xf32>
    %41 = vector.shape_cast %38 : vector<4x16xf32> to vector<1x4x16xf32>
    tpu.vector_store %arg6[%c0_24, %c0_25, %c0_26], %41 {strides = array<i32>} : memref<1x4x16xf32, #tpu.memory_space<vmem>>, vector<1x4x16xf32>,
    return
  }
  func.func @transform_0(%arg0: i32) -> (i32, i32, i32) {
    %c0_i32 = arith.constant 0 : i32
    %c0_i32_0 = arith.constant 0 : i32
    %c0_i32_1 = arith.constant 0 : i32
    return %arg0, %c0_i32, %c0_i32_0 : i32, i32, i32
  }
  func.func @transform_1(%arg0: i32) -> (i32, i32) {
    %c0_i32 = arith.constant 0 : i32
    %c0_i32_0 = arith.constant 0 : i32
    %c0_i32_1 = arith.constant 0 : i32
    return %c0_i32, %c0_i32_0 : i32, i32
  }
  func.func @transform_2(%arg0: i32) -> (i32, i32) {
    %c0_i32 = arith.constant 0 : i32
    %c0_i32_0 = arith.constant 0 : i32
    %c0_i32_1 = arith.constant 0 : i32
    return %c0_i32, %c0_i32_0 : i32, i32
  }
  func.func @transform_3(%arg0: i32) -> (i32, i32, i32) {
    %c0_i32 = arith.constant 0 : i32
    %c0_i32_0 = arith.constant 0 : i32
    %c0_i32_1 = arith.constant 0 : i32
    return %arg0, %c0_i32, %c0_i32_0 : i32, i32, i32
  }
  func.func @transform_4(%arg0: i32) -> (i32, i32, i32) {
    %c0_i32 = arith.constant 0 : i32
    %c0_i32_0 = arith.constant 0 : i32
    %c0_i32_1 = arith.constant 0 : i32
    return %arg0, %c0_i32, %c0_i32_0 : i32, i32, i32
  }
  func.func @transform_5(%arg0: i32) -> (i32, i32, i32) {
    %c0_i32 = arith.constant 0 : i32
    %c0_i32_0 = arith.constant 0 : i32
    %c0_i32_1 = arith.constant 0 : i32
    return %arg0, %c0_i32, %c0_i32_0 : i32, i32, i32
  }
}

</mosaic_0001>

<llo_original>
// kernel: tpu_custom_call.1
$region0: #{tpu_custom_call.1}
  #allocation0 [shape = 'u32[]', space=smem, size = 0x4, offset = 0x4, fixed_abs, tag = 'smem constant byte address 0x4 - core index']
  #allocation1 [shape = 'u32[144,128]{1,0:T(1,128)}', space=vmem, size = 0x12000, scoped, tag = 'internal scratch']
  #allocation2 [shape = 'f32[12,16]{1,0:T(8,128)}', space=vmem, size = 0x2000, scoped, tag = 'scratch operand']
  %s0 = inlined_call_operand.vmem [shape: f32[2,4,18], index: 0, kind: input, shape index: {}]
  %s1 = inlined_call_operand.vmem [shape: f32[4,12], index: 1, kind: input, shape index: {}]
  %s2 = inlined_call_operand.vmem [shape: f32[4,1], index: 2, kind: input, shape index: {}]
  %s3 = inlined_call_operand.vmem [shape: f32[2,4,1], index: 3, kind: input, shape index: {}]
  %s4 = inlined_call_operand.vmem [shape: f32[2,4,1], index: 4, kind: input, shape index: {}]
  %s5 = inlined_call_operand.hbm [shape: f32[2,4,16], index: 5, kind: output, shape index: {}]
  %s6 = sld [smem:[#allocation0]]
  $region53: #{tpu_custom_call.1} parent=0
    _
  %s8 = ssub.s32 1, %s6
  %s9 = scalar_select 0, %s8, %s6
  $region1: #{tpu_custom_call.1} parent=0
    #allocation3 [shape = 'u8[4096]{0}', space=vmem, size = 0x1000, scoped, tag = 'output window, operand 0']
    #allocation4 [shape = 's32[2]{0}', space=sflag, size = 0x8, scoped, tag = 'scoped memory for tpu_custom_call.1']
    %10 = vsyncpa [#allocation4], 0
    %s11 = scalar_lea.sflag [#allocation4], 1
    %12 = vsyncpa %s11, 0
    loop: start=0, step=1, limit=4
    $region2: #{tpu_custom_call.1} parent=1 // loop_pre_header
      _
    $region3: #{tpu_custom_call.1} parent=1 // loop_header
      %s14 = sphi 0, %s18
      %p15 = scmp.ge.s32.totalorder %s14, 4
      %s24 = sphi 0, %s26
      %s27 = sphi 0, %s24
      %s28 = sphi 0, %s27
      %s44 = sphi 0, %s28
      %s48 = sphi 0, %s48
      %s50 = sphi 0, %s48
      %s51 = sphi 0, %s50
      %s65 = sphi 0, %s51
      %s69 = sphi 0, %s69
      %s71 = sphi 0, %s69
      %s72 = sphi 0, %s71
      %s86 = sphi 0, %s72
      %s92 = sphi 0, %s94
      %s95 = sphi 0, %s92
      %s96 = sphi 0, %s95
      %s112 = sphi 0, %s96
      %s118 = sphi 0, %s120
      %s121 = sphi 0, %s118
      %s122 = sphi 0, %s121
      %s138 = sphi 0, %s122
      %s144 = sphi 0, %s146
      %s147 = sphi 0, %s144
      %s148 = sphi 0, %s147
      %s164 = sphi 0, %s148
    $region4: #{tpu_custom_call.1} parent=1 // loop_header_branch
      %17 = sbr.rel (%p15) target = $region8
    $region5: #{tpu_custom_call.1} parent=1 // loop_body
      %s19 = ssub.s32 %s14, 1
      %s20 = ssub.s32 %s14, 2
      %s21 = sadd.s32 %s14, 1
      %s22 = ssub.s32 %s14, %s21
      %p23 = scmp.eq.s32.totalorder %s22, 0
      %s25 = sadd.s32 %s24, 1
      %s26 = scalar_select %p23, %s24, %s25
      %p29 = pneg %p23
      %p30 = scmp.eq.s32.totalorder %s14, 1
      %p31 = por %p29, %p30
      %p32 = scmp.ne.s32.totalorder %s24, %s27
      %p33 = scmp.eq.s32.totalorder %s14, 0
      %p34 = por %p32, %p33
      %p35 = scmp.ne.s32.totalorder %s24, %s27
      %p36 = scmp.eq.s32.totalorder %s19, 1
      %p37 = por %p35, %p36
      %p38 = scmp.ne.s32.totalorder %s27, %s28
      %p39 = scmp.eq.s32.totalorder %s19, 0
      %p40 = por %p38, %p39
      %p41 = scmp.ne.s32.totalorder %s27, %s28
      %p42 = scmp.eq.s32.totalorder %s20, 1
      %p43 = por %p41, %p42
      %p45 = scmp.ne.s32.totalorder %s28, %s44
      %p46 = scmp.eq.s32.totalorder %s20, 0
      %p47 = por %p45, %p46
      %s49 = sadd.s32 %s48, 1
      %p52 = scmp.eq.s32.totalorder %s14, 1
      %p53 = scmp.ne.s32.totalorder %s48, %s50
      %p54 = scmp.eq.s32.totalorder %s14, 0
      %p55 = por %p53, %p54
      %p56 = scmp.ne.s32.totalorder %s48, %s50
      %p57 = scmp.eq.s32.totalorder %s19, 1
      %p58 = por %p56, %p57
      %p59 = scmp.ne.s32.totalorder %s50, %s51
      %p60 = scmp.eq.s32.totalorder %s19, 0
      %p61 = por %p59, %p60
      %p62 = scmp.ne.s32.totalorder %s50, %s51
      %p63 = scmp.eq.s32.totalorder %s20, 1
      %p64 = por %p62, %p63
      %p66 = scmp.ne.s32.totalorder %s51, %s65
      %p67 = scmp.eq.s32.totalorder %s20, 0
      %p68 = por %p66, %p67
      %s70 = sadd.s32 %s69, 1
      %p73 = scmp.eq.s32.totalorder %s14, 1
      %p74 = scmp.ne.s32.totalorder %s69, %s71
      %p75 = scmp.eq.s32.totalorder %s14, 0
      %p76 = por %p74, %p75
      %p77 = scmp.ne.s32.totalorder %s69, %s71
      %p78 = scmp.eq.s32.totalorder %s19, 1
      %p79 = por %p77, %p78
      %p80 = scmp.ne.s32.totalorder %s71, %s72
      %p81 = scmp.eq.s32.totalorder %s19, 0
      %p82 = por %p80, %p81
      %p83 = scmp.ne.s32.totalorder %s71, %s72
      %p84 = scmp.eq.s32.totalorder %s20, 1
      %p85 = por %p83, %p84
      %p87 = scmp.ne.s32.totalorder %s72, %s86
      %p88 = scmp.eq.s32.totalorder %s20, 0
      %p89 = por %p87, %p88
      %s90 = ssub.s32 %s14, %s21
      %p91 = scmp.eq.s32.totalorder %s90, 0
      %s93 = sadd.s32 %s92, 1
      %s94 = scalar_select %p91, %s92, %s93
      %p97 = pneg %p91
      %p98 = scmp.eq.s32.totalorder %s14, 1
      %p99 = por %p97, %p98
      %p100 = scmp.ne.s32.totalorder %s92, %s95
      %p101 = scmp.eq.s32.totalorder %s14, 0
      %p102 = por %p100, %p101
      %p103 = scmp.ne.s32.totalorder %s92, %s95
      %p104 = scmp.eq.s32.totalorder %s19, 1
      %p105 = por %p103, %p104
      %p106 = scmp.ne.s32.totalorder %s95, %s96
      %p107 = scmp.eq.s32.totalorder %s19, 0
      %p108 = por %p106, %p107
      %p109 = scmp.ne.s32.totalorder %s95, %s96
      %p110 = scmp.eq.s32.totalorder %s20, 1
      %p111 = por %p109, %p110
      %p113 = scmp.ne.s32.totalorder %s96, %s112
      %p114 = scmp.eq.s32.totalorder %s20, 0
      %p115 = por %p113, %p114
      %s116 = ssub.s32 %s14, %s21
      %p117 = scmp.eq.s32.totalorder %s116, 0
      %s119 = sadd.s32 %s118, 1
      %s120 = scalar_select %p117, %s118, %s119
      %p123 = pneg %p117
      %p124 = scmp.eq.s32.totalorder %s14, 1
      %p125 = por %p123, %p124
      %p126 = scmp.ne.s32.totalorder %s118, %s121
      %p127 = scmp.eq.s32.totalorder %s14, 0
      %p128 = por %p126, %p127
      %p129 = scmp.ne.s32.totalorder %s118, %s121
      %p130 = scmp.eq.s32.totalorder %s19, 1
      %p131 = por %p129, %p130
      %p132 = scmp.ne.s32.totalorder %s121, %s122
      %p133 = scmp.eq.s32.totalorder %s19, 0
      %p134 = por %p132, %p133
      %p135 = scmp.ne.s32.totalorder %s121, %s122
      %p136 = scmp.eq.s32.totalorder %s20, 1
      %p137 = por %p135, %p136
      %p139 = scmp.ne.s32.totalorder %s122, %s138
      %p140 = scmp.eq.s32.totalorder %s20, 0
      %p141 = por %p139, %p140
      %s142 = ssub.s32 %s14, %s21
      %p143 = scmp.eq.s32.totalorder %s142, 0
      %s145 = sadd.s32 %s144, 1
      %s146 = scalar_select %p143, %s144, %s145
      %p149 = pneg %p143
      %p150 = scmp.eq.s32.totalorder %s14, 1
      %p151 = por %p149, %p150
      %p152 = scmp.ne.s32.totalorder %s144, %s147
      %p153 = scmp.eq.s32.totalorder %s14, 0
      %p154 = por %p152, %p153
      %p155 = scmp.ne.s32.totalorder %s144, %s147
      %p156 = scmp.eq.s32.totalorder %s19, 1
      %p157 = por %p155, %p156
      %p158 = scmp.ne.s32.totalorder %s147, %s148
      %p159 = scmp.eq.s32.totalorder %s19, 0
      %p160 = por %p158, %p159
      %p161 = scmp.ne.s32.totalorder %s147, %s148
      %p162 = scmp.eq.s32.totalorder %s20, 1
      %p163 = por %p161, %p162
      %p165 = scmp.ne.s32.totalorder %s148, %s164
      %p166 = scmp.eq.s32.totalorder %s20, 0
      %p167 = por %p165, %p166
      %p168 = scmp.le.s32.totalorder 1, %s14
      %p169 = scmp.lt.s32.totalorder %s14, 3
      %p170 = pnand %p168, %p169
      %p171 = pneg %p170
      // Predicated region
      $region9: #{tpu_custom_call.1} parent=5 // pred_check
        _
      $region10: #{tpu_custom_call.1} parent=5 // pred_check_branch
        %173 = sbr.rel (%p170) target = $region12
      $region11: #{tpu_custom_call.1} parent=5 // pred_region
        %s174 = ssub.s32 %s14, 1
        // Predicated region
        $region13: #{tpu_custom_call.1} parent=11 // pred_check
          %p175 = pneg %p61
        $region14: #{tpu_custom_call.1} parent=11 // pred_check_branch
          %177 = sbr.rel (%p175) target = $region16
        $region15: #{tpu_custom_call.1} parent=11 // pred_region
          _
        $region16: #{tpu_custom_call.1} parent=11 // pred_fallthru
          _
        // Predicated region
        $region17: #{tpu_custom_call.1} parent=11 // pred_check
          %p178 = pneg %p82
        $region18: #{tpu_custom_call.1} parent=11 // pred_check_branch
          %180 = sbr.rel (%p178) target = $region20
        $region19: #{tpu_custom_call.1} parent=11 // pred_region
          _
        $region20: #{tpu_custom_call.1} parent=11 // pred_fallthru
          _
      $region12: #{tpu_custom_call.1} parent=5 // pred_fallthru
        _
      %p181 = scmp.lt.s32.totalorder %s14, 2
      // Predicated region
      $region21: #{tpu_custom_call.1} parent=5 // pred_check
        %p182 = pneg %p181
      $region22: #{tpu_custom_call.1} parent=5 // pred_check_branch
        %184 = sbr.rel (%p182) target = $region24
      $region23: #{tpu_custom_call.1} parent=5 // pred_region
        // Predicated region
        $region25: #{tpu_custom_call.1} parent=23 // pred_check
          %p185 = pneg %p34
        $region26: #{tpu_custom_call.1} parent=23 // pred_check_branch
          %187 = sbr.rel (%p185) target = $region28
        $region27: #{tpu_custom_call.1} parent=23 // pred_region
          %p188 = scmp.lt.s32.totalorder %s14, 1
          %s189 = scalar_select %p188, %s14, 1
          %s190 = smul.addr %s189, 4
          %s191 = scalar_lea.vmem %s0, %s190
        $region28: #{tpu_custom_call.1} parent=23 // pred_fallthru
          _
        // Predicated region
        $region29: #{tpu_custom_call.1} parent=23 // pred_check
          %p192 = pneg %p102
        $region30: #{tpu_custom_call.1} parent=23 // pred_check_branch
          %194 = sbr.rel (%p192) target = $region32
        $region31: #{tpu_custom_call.1} parent=23 // pred_region
          %p195 = scmp.lt.s32.totalorder %s14, 1
          %s196 = scalar_select %p195, %s14, 1
          %s197 = smul.addr %s196, 4
          %s198 = scalar_lea.vmem %s3, %s197
        $region32: #{tpu_custom_call.1} parent=23 // pred_fallthru
          _
        // Predicated region
        $region33: #{tpu_custom_call.1} parent=23 // pred_check
          %p199 = pneg %p128
        $region34: #{tpu_custom_call.1} parent=23 // pred_check_branch
          %201 = sbr.rel (%p199) target = $region36
        $region35: #{tpu_custom_call.1} parent=23 // pred_region
          %p202 = scmp.lt.s32.totalorder %s14, 1
          %s203 = scalar_select %p202, %s14, 1
          %s204 = smul.addr %s203, 4
          %s205 = scalar_lea.vmem %s4, %s204
        $region36: #{tpu_custom_call.1} parent=23 // pred_fallthru
          _
      $region24: #{tpu_custom_call.1} parent=5 // pred_fallthru
        _
      %p206 = scmp.le.s32.totalorder 1, %s14
      %p207 = scmp.lt.s32.totalorder %s14, 3
      %p208 = pnand %p206, %p207
      %p209 = pneg %p208
      // Predicated region
      $region37: #{tpu_custom_call.1} parent=5 // pred_check
        _
      $region38: #{tpu_custom_call.1} parent=5 // pred_check_branch
        %211 = sbr.rel (%p208) target = $region40
      $region39: #{tpu_custom_call.1} parent=5 // pred_region
        %s212 = ssub.s32 %s14, 1
        %p213 = scmp.lt.s32.totalorder %s19, 1
        %s214 = scalar_select %p213, %s19, 1
        %s215 = smul.addr %s214, 4
        %s216 = scalar_lea.vmem %s0, %s215
        %p217 = pneg %p40
        %p218 = pneg %p37
        %p219 = pneg %p61
        %p220 = pneg %p58
        %p221 = pneg %p82
        %p222 = pneg %p79
        %p223 = scmp.lt.s32.totalorder %s19, 1
        %s224 = scalar_select %p223, %s19, 1
        %s225 = smul.addr %s224, 4
        %s226 = scalar_lea.vmem %s3, %s225
        %p227 = pneg %p108
        %p228 = pneg %p105
        %p229 = scmp.lt.s32.totalorder %s19, 1
        %s230 = scalar_select %p229, %s19, 1
        %s231 = smul.addr %s230, 4
        %s232 = scalar_lea.vmem %s4, %s231
        %p233 = pneg %p134
        %p234 = pneg %p131
        %p235 = pneg %p160
        %p236 = pneg %p157
        %s237 = sand.u32 %s147, 1
        %s238 = scalar_lea.sflag [#allocation4], %s237
        %s239 = sand.u32 %s147, 1
        %s240 = smul.addr %s239, 4
        %s241 = scalar_lea.vmem [#allocation3], %s240
        %p242 = scmp.lt.s32.totalorder %s19, 1
        %s243 = scalar_select %p242, %s19, 1
        %s244 = smul.addr %s243, 4
        %s245 = scalar_lea.vmem %s0, %s244
        %p246 = scmp.lt.s32.totalorder %s19, 1
        %s247 = scalar_select %p246, %s19, 1
        %s248 = smul.addr %s247, 4
        %s249 = scalar_lea.vmem %s3, %s248
        %p250 = scmp.lt.s32.totalorder %s19, 1
        %s251 = scalar_select %p250, %s19, 1
        %s252 = smul.addr %s251, 4
        %s253 = scalar_lea.vmem %s4, %s252
        %v254 = vld [vmem:[%s245] sm:$0xf]
        %vm255 = vcmask 125952
        %256 = vst.msk [vmem:[#allocation2] sm:$0xf] %vm255, %v254
        %258 = vrot.lane.b32.xlu0 %v254, 127
        %v259 = vpop.permute.xlu0 %258
        %261 = vst.msk [vmem:[#allocation2 + $0x4] sm:$0xf] %vm255, %v259
        %262 = vrot.lane.b32.xlu0 %v254, 126
        %v263 = vpop.permute.xlu0 %262
        %265 = vst.msk [vmem:[#allocation2 + $0x8] sm:$0xf] %vm255, %v263
        %v266 = vld [vmem:[%s1] sm:$0xf]
        %v267 = vld [vmem:[#allocation2] sm:$0xff]
        %v268 = vld [vmem:[#allocation2 + $0x8] sm:$0xf]
        %v269 = vld [vmem:[%s2] sm:$0xf]
        %271 = vset.pattern.permute.xlu0 0
        %272 = vperm.xlu0 %271, %v269
        %v273 = vpop.permute.xlu0 %272
        %vm275 = vcmask 97280
        %v277 = vsel %vm275, %v266, 0
        %vm279 = vcmask 1043456
        %v281 = vsel %vm279, %v268, 0
        %283 = vmatprep.subr.mxu0 0.0
        %284 = vmatpush1.msra.mxu0 0.0
        %285 = vmatprep.subr.mxu0 0.0
        %286 = vmatpush1.msra.mxu0 0.0
        %287 = vmatprep.subr.mxu0 0.0
        %288 = vmatpush1.msra.mxu0 0.0
        %289 = vmatprep.subr.mxu0 0.0
        %290 = vmatpush1.msra.mxu0 0.0
        %291 = vmatprep.subr.mxu0 0.0
        %292 = vmatpush1.msra.mxu0 0.0
        %293 = vmatprep.subr.mxu0 0.0
        %294 = vmatpush1.msra.mxu0 0.0
        %295 = vmatprep.subr.mxu0 0.0
        %296 = vmatpush1.msra.mxu0 0.0
        %297 = vmatprep.subr.mxu0 0.0
        %298 = vmatpush1.msra.mxu0 0.0
        %299 = vmatprep.subr.mxu0 0.0
        %300 = vmatpush1.msra.mxu0 0.0
        %301 = vmatprep.subr.mxu0 0.0
        %302 = vmatpush1.msra.mxu0 0.0
        %303 = vmatprep.subr.mxu0 0.0
        %304 = vmatpush1.msra.mxu0 0.0
        %305 = vmatprep.subr.mxu0 0.0
        %306 = vmatpush1.msra.mxu0 0.0
        %307 = vmatprep.subr.mxu0 0.0
        %308 = vmatpush1.msra.mxu0 0.0
        %309 = vmatprep.subr.mxu0 0.0
        %310 = vmatpush1.msra.mxu0 0.0
        %311 = vmatprep.subr.mxu0 0.0
        %312 = vmatpush1.msra.mxu0 %v281
        %313 = vmatprep.subr.mxu0 0.0
        %314 = vmatpush1.msra.mxu0 %v267
        %315 = vmatprep.subr.mxu0 0.0
        %316 = vmatpush2.msra.mxu0 0.0
        %317 = vmatprep.subr.mxu0 0.0
        %318 = vmatpush2.msra.mxu0 0.0
        %319 = vmatprep.subr.mxu0 0.0
        %320 = vmatpush2.msra.mxu0 0.0
        %321 = vmatprep.subr.mxu0 0.0
        %322 = vmatpush2.msra.mxu0 0.0
        %323 = vmatprep.subr.mxu0 0.0
        %324 = vmatpush2.msra.mxu0 0.0
        %325 = vmatprep.subr.mxu0 0.0
        %326 = vmatpush2.msra.mxu0 0.0
        %327 = vmatprep.subr.mxu0 0.0
        %328 = vmatpush2.msra.mxu0 0.0
        %329 = vmatprep.subr.mxu0 0.0
        %330 = vmatpush2.msra.mxu0 0.0
        %331 = vmatprep.subr.mxu0 0.0
        %332 = vmatpush2.msra.mxu0 0.0
        %333 = vmatprep.subr.mxu0 0.0
        %334 = vmatpush2.msra.mxu0 0.0
        %335 = vmatprep.subr.mxu0 0.0
        %336 = vmatpush2.msra.mxu0 0.0
        %337 = vmatprep.subr.mxu0 0.0
        %338 = vmatpush2.msra.mxu0 0.0
        %339 = vmatprep.subr.mxu0 0.0
        %340 = vmatpush2.msra.mxu0 0.0
        %341 = vmatprep.subr.mxu0 0.0
        %342 = vmatpush2.msra.mxu0 0.0
        %343 = vmatprep.subr.mxu0 0.0
        %344 = vmatpush2.msra.mxu0 0.0
        %345 = vmatprep.subr.mxu0 0.0
        %346 = vmatpush2.msra.mxu0 0.0
        %347 = vmatprep.mubr.f32.mxu0 0.0
        %348 = vmatmul.mubr.f32.gmra.mxu0 %v277
        %v349 = vpop.f32.mrf.mxu0
        %v350 = vadd.f32 %v273, %v349
        %v351 = vpop.f32.mrf.mxu0
        %352 = vdwg.mxu0
        %v353 = vmax.f32 %v350, 0.0
        %v354 = vsel %vm255, %v353, 0.0
        %355 = vadd.xlane.f32.xlu0 %v354
        %v356 = vpop.xlane.xlu0 %355
        %v357 = vmul.f32 %v356, 0.0625
        %v358 = vsub.f32 %v353, %v357
        %v359 = vmul.f32 %v358, %v358
        %v360 = vsel %vm255, %v359, 0.0
        %361 = vadd.xlane.f32.xlu0 %v360
        %v362 = vpop.xlane.xlu0 %361
        %v363 = vmul.f32 %v362, 0.06666667
        %v364 = vld [vmem:[%s249] sm:$0xf]
        %v365 = vadd.f32 %v363, 1e-08
        %v366 = vrsqrt.pop %v365
        %v367 = vmul.f32 %v364, %v366
        %369 = vset.pattern.permute.xlu0 0
        %370 = vperm.xlu0 %369, %v367
        %v371 = vpop.permute.xlu0 %370
        %v373 = vmul.f32 %v371, %v358
        %v374 = vld [vmem:[%s253] sm:$0xf]
        %376 = vset.pattern.permute.xlu0 0
        %377 = vperm.xlu0 %376, %v374
        %v378 = vpop.permute.xlu0 %377
        %v380 = vadd.f32 %v373, %v378
        %381 = vst.msk [vmem:[%s241] sm:$0xf] %vm255, %v380
        %s382 = sand.u32 %s147, 1
        %s383 = scalar_lea.sflag [#allocation4], %s382
        %s384 = sand.u32 %s147, 1
        %s385 = smul.addr %s384, 4
        %s386 = scalar_lea.vmem [#allocation3], %s385
        // Predicated region
        $region41: #{tpu_custom_call.1} parent=39 // pred_check
          %p387 = pneg %p157
        $region42: #{tpu_custom_call.1} parent=39 // pred_check_branch
          %389 = sbr.rel (%p387) target = $region44
        $region43: #{tpu_custom_call.1} parent=39 // pred_region
          %s391 = ssub.s32 64, 64
          %392 = vsyncadd %s383, %s391
          %s393 = smul.addr %s19, 64
          %s394 = scalar_lea.hbm %s5, %s393
          %s396 = sshll.u32 %s386, 4
          %s397 = int_to_ptr.vmem [resolvable:$true] %s396
          %399 = dma.vmem_to_hbm [thread:$0]  %s397, 64, %s394, %s383
        $region44: #{tpu_custom_call.1} parent=39 // pred_fallthru
          _
      $region40: #{tpu_custom_call.1} parent=5 // pred_fallthru
        _
      %p400 = scmp.le.s32.totalorder 2, %s14
      // Predicated region
      $region45: #{tpu_custom_call.1} parent=5 // pred_check
        %p401 = pneg %p400
      $region46: #{tpu_custom_call.1} parent=5 // pred_check_branch
        %403 = sbr.rel (%p401) target = $region48
      $region47: #{tpu_custom_call.1} parent=5 // pred_region
        %s404 = ssub.s32 %s14, 2
        // Predicated region
        $region49: #{tpu_custom_call.1} parent=47 // pred_check
          %p405 = pneg %p163
        $region50: #{tpu_custom_call.1} parent=47 // pred_check_branch
          %407 = sbr.rel (%p405) target = $region52
        $region51: #{tpu_custom_call.1} parent=47 // pred_region
          %s408 = sand.u32 %s148, 1
          %s409 = scalar_lea.sflag [#allocation4], %s408
          %s410 = sand.u32 %s148, 1
          %s411 = smul.addr %s410, 4
          %s412 = scalar_lea.vmem [#allocation3], %s411
          %413 = dma.done %s409, 64
        $region52: #{tpu_custom_call.1} parent=47 // pred_fallthru
          _
      $region48: #{tpu_custom_call.1} parent=5 // pred_fallthru
        _
    $region6: #{tpu_custom_call.1} parent=1 // loop_footer
      %s18 = sadd.s32 1, %s14
    $region7: #{tpu_custom_call.1} parent=1 // loop_footer_branch
      %13 = sbr.rel target = $region3
    $region8: #{tpu_custom_call.1} parent=1 // loop_exit
      _
    %414 = vsyncpa [#allocation4], 1
    %s415 = scalar_lea.sflag [#allocation4], 1
    %416 = vsyncpa %s415, 1

</llo_original>
